<compile_context>
chip_gen: v6e
topology: v6e:2x2x1
jax: 0.10.0
libtpu: 0.0.40
codegen_flags: <defaults>
</compile_context>

<pallas_src>
import math
import jax
import jax.numpy as jnp
from jax.experimental import pallas as pl
from jax.experimental.pallas import tpu as pltpu


def _build_pe(d_model: int, max_len: int = 60) -> jnp.ndarray:
    """Deterministic sinusoidal positional-encoding table (matches PyTorch __init__)."""
    position = jnp.arange(0, max_len, dtype=jnp.float32)[:, None]            # (max_len, 1)
    div_term = jnp.exp(jnp.arange(0, d_model, 2, dtype=jnp.float32)
                       * (-math.log(10000.0) / d_model))                      # (d_model/2,)
    pe = jnp.zeros((max_len, d_model), dtype=jnp.float32)
    pe = pe.at[:, 0::2].set(jnp.sin(position * div_term))
    pe = pe.at[:, 1::2].set(jnp.cos(position * div_term))
    return pe                                                                  # (max_len, d_model)


# ---------------------------------------------------------------------------
# Kernel (shared by both layouts): x-tile + pe-tile, pe broadcasts over rows.
# ---------------------------------------------------------------------------

def _add_bcast_kernel(x_ref, pe_ref, o_ref):
    # Lane-dense path:  x/o (tb, tf),     pe (1, tf)
    # 3-D fallback:     x/o (tb_b, S, D), pe (1, S, D)
    o_ref[...] = x_ref[...] + pe_ref[...]


# ---------------------------------------------------------------------------
# Tiling policy
# ---------------------------------------------------------------------------

def _device_kind() -> str:
    try:
        return jax.devices()[0].device_kind.lower()
    except Exception:
        return ""


def _chip_policy():
    """Returns (per-block byte budget, has_two_tensorcores)."""
    kind = _device_kind()
    if "v7" in kind:
        return 6 << 20, True       # 64 MiB physical VMEM, 2 TCs/chip
    if "v5" in kind:
        return 2 << 20, False      # 16 MiB scoped-VMEM default: stay small
    return 4 << 20, False          # v6e / unknown


def _sublane_rows(itemsize: int) -> int:
    if itemsize >= 4:
        return 8
    if itemsize == 2:
        return 16
    return 32


def _plan_lane_dense(B: int, F: int, itemsize: int, budget: int, want_multi: bool):
    """Pick (tb, tf) so tb*tf*itemsize <= budget, tf % 128 == 0 (or tf == F),
    tb sublane-aligned (or tb == B)."""
    sub = _sublane_rows(itemsize)
    # F tile: sized so that a `sub`-row slab of it always fits the budget.
    tf_cap = max(128, (budget // (sub * itemsize)) // 128 * 128)
    tf = F if F <= tf_cap else tf_cap
    rows_cap = max(sub, budget // (tf * itemsize))
    tb = B if B <= rows_cap else (rows_cap // sub) * sub
    # Megacore nudge: never leave a 2-TC chip with a single grid step for
    # tensors worth running in Pallas.
    if want_multi and pl.cdiv(B, tb) * pl.cdiv(F, tf) < 2:
        if B >= 2 * sub:
            tb = ((pl.cdiv(B, 2) + sub - 1) // sub) * sub
        elif F >= 2 * 128:
            tf = ((pl.cdiv(F, 2) + 127) // 128) * 128
    return tb, tf


def _vmem_limit_from(needed_bytes: int):
    """Only raise the scoped-VMEM limit when we'd approach v5e's 16 MiB default."""
    if needed_bytes > (12 << 20):
        return min(48 << 20, needed_bytes * 3 // 2 + (2 << 20))
    return None


# ---------------------------------------------------------------------------
# Wrapper
# ---------------------------------------------------------------------------

def positional_encoding(x: jnp.ndarray, pe: jnp.ndarray, *,
                        min_pallas_bytes: int = 2 << 20,
                        donate_x: bool = False) -> jnp.ndarray:
    """x: (B, S, D); pe: (max_len, D). Returns x + pe[:S] broadcast over batch."""
    B, S, D = x.shape
    max_len = pe.shape[0]
    assert S <= max_len, f"seq_len {S} exceeds max_len {max_len}"
    pe_s = pe[:S, :].astype(x.dtype)

    itemsize = jnp.dtype(x.dtype).itemsize
    total_bytes = B * S * D * itemsize
    # A Pallas custom-call launch is never worth it for KB-scale adds.
    if total_bytes < min_pallas_bytes:
        return x + pe_s[None, :, :]

    budget, two_cores = _chip_policy()
    want_multi = two_cores and total_bytes >= (2 << 20)

    cost = pl.CostEstimate(flops=B * S * D, transcendentals=0,
                           bytes_accessed=(2 * B * S * D + S * D) * itemsize)

    F = S * D
    if F % 128 == 0:
        # Lane-dense path: flatten (S, D) -> F so stores are full-width vst,
        # and tile both batch rows and F columns.
        tb, tf = _plan_lane_dense(B, F, itemsize, budget, want_multi)
        block_bytes = tb * tf * itemsize
        needed = 4 * block_bytes + 2 * tf * itemsize        # 2x(x,out) + 2x pe
        vmem_limit = _vmem_limit_from(needed)

        x2 = x.reshape(B, F)
        pe2 = pe_s.reshape(1, F)
        grid = (pl.cdiv(B, tb), pl.cdiv(F, tf))

        out2 = pl.pallas_call(
            _add_bcast_kernel,
            out_shape=jax.ShapeDtypeStruct((B, F), x.dtype),
            grid_spec=pltpu.PrefetchScalarGridSpec(
                num_scalar_prefetch=0,
                grid=grid,
                in_specs=[
                    pl.BlockSpec((tb, tf), lambda i, j: (i, j)),
                    # pe: constant row-block, tiled along F only.
                    pl.BlockSpec((1, tf), lambda i, j: (0, j)),
                ],
                out_specs=pl.BlockSpec((tb, tf), lambda i, j: (i, j)),
            ),
            compiler_params=pltpu.CompilerParams(
                dimension_semantics=("parallel", "parallel"),
                vmem_limit_bytes=vmem_limit,
            ),
            cost_estimate=cost,
            input_output_aliases={0: 0} if donate_x else {},
        )(x2, pe2)
        return out2.reshape(B, S, D)

    # Fallback (S*D not a multiple of 128): fuse as many batch elements as fit
    # the budget into one (tb_b, S, D) block (full S/D extents satisfy the
    # (8,128) rule); pe rides along as a constant-index (1, S, D) block.
    slab = S * D * itemsize
    tb_b = max(1, min(B, budget // max(slab, 1)))
    if want_multi and pl.cdiv(B, tb_b) < 2 and B >= 2:
        tb_b = pl.cdiv(B, 2)
    needed = 4 * tb_b * slab + 2 * slab
    vmem_limit = _vmem_limit_from(needed)

    return pl.pallas_call(
        _add_bcast_kernel,
        out_shape=jax.ShapeDtypeStruct((B, S, D), x.dtype),
        grid_spec=pltpu.PrefetchScalarGridSpec(
            num_scalar_prefetch=0,
            grid=(pl.cdiv(B, tb_b),),
            in_specs=[
                pl.BlockSpec((tb_b, S, D), lambda b: (b, 0, 0)),
                pl.BlockSpec((1, S, D), lambda b: (0, 0, 0)),
            ],
            out_specs=pl.BlockSpec((tb_b, S, D), lambda b: (b, 0, 0)),
        ),
        compiler_params=pltpu.CompilerParams(
            dimension_semantics=("parallel",),
            vmem_limit_bytes=vmem_limit,
        ),
        cost_estimate=cost,
    )(x, pe_s[None, :, :])


if __name__ == "__main__":
    MAX_LEN = 60
    key = jax.random.PRNGKey(0)
    k0, k1 = jax.random.split(key)

    # Primary case (lane-dense path): batch=2, seq=8, d_model=32 (S*D = 256).
    B, S, D = 2, 8, 32
    x = jax.random.normal(k0, (B, S, D), dtype=jnp.float32)
    pe = _build_pe(D, MAX_LEN)
    # min_pallas_bytes=0 forces the Pallas path at this tiny demo size so the
    # kernel is exercised (production default routes KB-scale adds to XLA).
    out = jax.block_until_ready(positional_encoding(x, pe, min_pallas_bytes=0))
    ref = x + pe[None, :S, :]
    assert out.shape == (B, S, D)
    assert jnp.allclose(out, ref, atol=1e-6, rtol=1e-6), "lane-dense path mismatch"

    # Secondary case (3-D fallback path): d_model=24 -> S*D = 192 (not lane-aligned).
    B2, S2, D2 = 2, 8, 24
    x2 = jax.random.normal(k1, (B2, S2, D2), dtype=jnp.float32)
    pe2 = _build_pe(D2, MAX_LEN)
    out2 = jax.block_until_ready(positional_encoding(x2, pe2, min_pallas_bytes=0))
    ref2 = x2 + pe2[None, :S2, :]
    assert out2.shape == (B2, S2, D2)
    assert jnp.allclose(out2, ref2, atol=1e-6, rtol=1e-6), "fallback path mismatch"

    print("KERNEL_OK")
</pallas_src>

<mosaic_0001>
module attributes {stable_mosaic.version = 11 : i64} {
  func.func @_add_bcast_kernel(%arg0: i32, %arg1: i32, %arg2: memref<2x256xf32, #tpu.memory_space<vmem>>, %arg3: memref<1x256xf32, #tpu.memory_space<vmem>>, %arg4: memref<2x256xf32, #tpu.memory_space<vmem>>) attributes {dimension_semantics = [#tpu.dimension_semantics<parallel>, #tpu.dimension_semantics<parallel>], iteration_bounds = array<i64: 1, 1>, scalar_prefetch = 0 : i64, scratch_operands = 0 : i64, tpu.core_type = #tpu.core_type<tc>, window_params = [{transform_indices = @transform_0, window_bounds = array<i64: 2, 256>}, {transform_indices = @transform_1, window_bounds = array<i64: 1, 256>}, {transform_indices = @transform_2, window_bounds = array<i64: 2, 256>}]} {
    %c0 = arith.constant 0 : index
    %c0_0 = arith.constant 0 : index
    %0 = vector.load %arg2[%c0, %c0_0] : memref<2x256xf32, #tpu.memory_space<vmem>>, vector<2x256xf32>
    %c0_1 = arith.constant 0 : index
    %c0_2 = arith.constant 0 : index
    %1 = vector.load %arg3[%c0_1, %c0_2] : memref<1x256xf32, #tpu.memory_space<vmem>>, vector<1x256xf32>
    %2 = vector.broadcast %1 : vector<1x256xf32> to vector<2x256xf32>
    %3 = arith.addf %0, %2 : vector<2x256xf32>
    %c0_3 = arith.constant 0 : index
    %c0_4 = arith.constant 0 : index
    %4 = vector.load %arg4[%c0_3, %c0_4] : memref<2x256xf32, #tpu.memory_space<vmem>>, vector<2x256xf32>
    tpu.vector_store %arg4[%c0_3, %c0_4], %3 {strides = array<i32>} : memref<2x256xf32, #tpu.memory_space<vmem>>, vector<2x256xf32>,
    return
  }
  func.func @transform_0(%arg0: i32, %arg1: i32) -> (i32, i32) {
    %c0_i32 = arith.constant 0 : i32
    return %arg0, %arg1 : i32, i32
  }
  func.func @transform_1(%arg0: i32, %arg1: i32) -> (i32, i32) {
    %c0_i32 = arith.constant 0 : i32
    %c0_i32_0 = arith.constant 0 : i32
    return %c0_i32, %arg1 : i32, i32
  }
  func.func @transform_2(%arg0: i32, %arg1: i32) -> (i32, i32) {
    %c0_i32 = arith.constant 0 : i32
    return %arg0, %arg1 : i32, i32
  }
}

</mosaic_0001>

<llo_original>
// kernel: tpu_custom_call.1
$region0: #{tpu_custom_call.1}
  #allocation0 [shape = 'u32[]', space=smem, size = 0x4, offset = 0x4, fixed_abs, tag = 'smem constant byte address 0x4 - core index']
  #allocation1 [shape = 'u32[144,128]{1,0:T(1,128)}', space=vmem, size = 0x12000, scoped, tag = 'internal scratch']
  %s0 = inlined_call_operand.hbm [shape: f32[2,256], index: 0, kind: input, shape index: {}]
  %s1 = inlined_call_operand.hbm [shape: f32[1,256], index: 1, kind: input, shape index: {}]
  %s2 = inlined_call_operand.hbm [shape: f32[2,256], index: 2, kind: output, shape index: {}]
  %s3 = sld [smem:[#allocation0]]
  $region26: #{tpu_custom_call.1} parent=0
    _
  %s5 = ssub.s32 1, %s3
  %s6 = scalar_select 0, %s5, %s3
  $region1: #{tpu_custom_call.1} parent=0
    #allocation2 [shape = 'u8[2048]{0}', space=vmem, size = 0x800, scoped, tag = 'input window, operand 0, single buffered']
    #allocation3 [shape = 's32[1]{0}', space=sflag, size = 0x4, scoped, tag = 'scoped memory for tpu_custom_call.1']
    #allocation4 [shape = 's32[1]{0}', space=sflag, size = 0x4, scoped, tag = 'scoped memory for tpu_custom_call.1']
    #allocation5 [shape = 'u8[1024]{0}', space=vmem, size = 0x400, scoped, tag = 'input window, operand 1, single buffered']
    #allocation6 [shape = 's32[1]{0}', space=sflag, size = 0x4, scoped, tag = 'scoped memory for tpu_custom_call.1']
    #allocation7 [shape = 'u8[2048]{0}', space=vmem, size = 0x800, scoped, tag = 'output window, operand 0, single buffered']
    %7 = vsyncpa [#allocation3], 0
    %8 = vsyncpa [#allocation6], 0
    %9 = vsyncpa [#allocation4], 0
    // Predicated region
    $region2: #{tpu_custom_call.1} parent=1 // pred_check
      _
    $region3: #{tpu_custom_call.1} parent=1 // pred_check_branch
      %11 = sbr.rel (0) target = $region5
    $region4: #{tpu_custom_call.1} parent=1 // pred_region
      %s13 = ssub.s32 64, 64
      %14 = vsyncadd [#allocation3], %s13
      %s16 = sshll.u32 [#allocation2], 4
      %s17 = int_to_ptr.vmem [resolvable:$true] %s16
      %19 = dma.hbm_to_vmem [thread:$0]  %s0, 64, %s17, [#allocation3]
    $region5: #{tpu_custom_call.1} parent=1 // pred_fallthru
      _
    // Predicated region
    $region6: #{tpu_custom_call.1} parent=1 // pred_check
      _
    $region7: #{tpu_custom_call.1} parent=1 // pred_check_branch
      %21 = sbr.rel (0) target = $region9
    $region8: #{tpu_custom_call.1} parent=1 // pred_region
      %s23 = ssub.s32 32, 32
      %24 = vsyncadd [#allocation6], %s23
      %s26 = sshll.u32 [#allocation5], 4
      %s27 = int_to_ptr.vmem [resolvable:$true] %s26
      %29 = dma.hbm_to_vmem [thread:$0]  %s1, 32, %s27, [#allocation6]
    $region9: #{tpu_custom_call.1} parent=1 // pred_fallthru
      _
    // Predicated region
    $region10: #{tpu_custom_call.1} parent=1 // pred_check
      _
    $region11: #{tpu_custom_call.1} parent=1 // pred_check_branch
      %31 = sbr.rel (0) target = $region13
    $region12: #{tpu_custom_call.1} parent=1 // pred_region
      %32 = dma.done [#allocation3], 64
    $region13: #{tpu_custom_call.1} parent=1 // pred_fallthru
      _
    // Predicated region
    $region14: #{tpu_custom_call.1} parent=1 // pred_check
      _
    $region15: #{tpu_custom_call.1} parent=1 // pred_check_branch
      %34 = sbr.rel (0) target = $region17
    $region16: #{tpu_custom_call.1} parent=1 // pred_region
      %35 = dma.done [#allocation6], 32
    $region17: #{tpu_custom_call.1} parent=1 // pred_fallthru
      _
    %v36 = vld [vmem:[#allocation2] sm:$0xf]
    %v37 = vld [vmem:[#allocation5] sm:$0x3]
    %v39 = vlaneseq
    %v40 = vshrl.u32 %v39, 7
    %v41 = vsub.s32 0, %v40
    %v42 = vrot.slane %v37, %v41
    %v43 = vlaneseq
    %v44 = vshrl.u32 %v43, 7
    %v45 = vsub.s32 1, %v44
    %v46 = vrot.slane %v37, %v45
    %v47 = vcombine.low %v42, %v46
    %v49 = vunpack.c.l.s4 1983009808
    %v50 = vunpack.c.0.s8 %v49
    %v51 = vlaneseq
    %v52 = vshrl.u32 %v51, 7
    %v53 = vsub.s32 %v50, %v52
    %v54 = vrot.slane %v47, %v53
    %v56 = vadd.f32 %v36, %v54
    %57 = vst [vmem:[#allocation7] sm:$0xf] %v56
    // Predicated region
    $region18: #{tpu_custom_call.1} parent=1 // pred_check
      _
    $region19: #{tpu_custom_call.1} parent=1 // pred_check_branch
      %59 = sbr.rel (0) target = $region21
    $region20: #{tpu_custom_call.1} parent=1 // pred_region
      %s61 = ssub.s32 64, 64
      %62 = vsyncadd [#allocation4], %s61
      %s64 = sshll.u32 [#allocation7], 4
      %s65 = int_to_ptr.vmem [resolvable:$true] %s64
      %67 = dma.vmem_to_hbm [thread:$0]  %s65, 64, %s2, [#allocation4]
    $region21: #{tpu_custom_call.1} parent=1 // pred_fallthru
      _
    // Predicated region
    $region22: #{tpu_custom_call.1} parent=1 // pred_check
      _
    $region23: #{tpu_custom_call.1} parent=1 // pred_check_branch
      %69 = sbr.rel (0) target = $region25
    $region24: #{tpu_custom_call.1} parent=1 // pred_region
      %70 = dma.done [#allocation4], 64
    $region25: #{tpu_custom_call.1} parent=1 // pred_fallthru
      _
    %71 = vsyncpa [#allocation3], 1
    %72 = vsyncpa [#allocation6], 1
    %73 = vsyncpa [#allocation4], 1

</llo_original>
